<compile_context>
chip_gen: v7x
topology: tpu7x:2x2x1
jax: 0.10.0
libtpu: 0.0.40
codegen_flags: <defaults>
</compile_context>

<pallas_src>
import jax
import jax.numpy as jnp
from jax.experimental import pallas as pl
from jax.experimental.pallas import tpu as pltpu


# --------------------------------------------------------------------------
# Kernels
# --------------------------------------------------------------------------
def _square_kernel(x1_ref, a_ref):
    # A = x1 @ x1  (one-time M^3 work; gridless, whole x1 resident in VMEM).
    x1 = x1_ref[...]
    a_ref[...] = jnp.dot(x1, x1, preferred_element_type=jnp.float32).astype(a_ref.dtype)


def _mm_add_kernel(a_ref, x2_ref, inp_ref, out_ref):
    # out_tile = A @ x2_tile + inp_tile  (add fused into the matmul epilogue;
    # single MXU pass per tile, f32 accumulation).
    out_ref[...] = (
        jnp.dot(a_ref[...], x2_ref[...], preferred_element_type=jnp.float32)
        + inp_ref[...]
    ).astype(out_ref.dtype)


def _small_kernel(x1_ref, x2_ref, inp_ref, out_ref):
    # Gridless tiny-shape path: do the whole chain in one VMEM block.
    x1 = x1_ref[...]
    a = jnp.dot(x1, x1, preferred_element_type=jnp.float32)
    out_ref[...] = (
        jnp.dot(a, x2_ref[...], preferred_element_type=jnp.float32) + inp_ref[...]
    ).astype(out_ref.dtype)


# --------------------------------------------------------------------------
# Helpers
# --------------------------------------------------------------------------
def _check_shapes(x1, x2, inp):
    m, k = x1.shape
    k2, n = x2.shape
    assert k == k2, "inner dims of x1 @ x2 must match"
    # v2 = x1 @ v1 requires x1 to be square (x1.shape[1] == x1.shape[0]).
    assert m == k, "x1 must be square for the chained matmul x1 @ (x1 @ x2)"
    assert inp.shape == (m, n), "inp must match the (M, N) result shape"
    return m, k, n


def _pick_tn(n, requested_tn):
    """Pick the output tile width.

    v6e/v7x MXU is 256 wide -> default 256.  On v7x (2 TCs) keep the grid at
    >= 2 steps whenever N allows so 'parallel' semantics can shard it; never
    grow tn to the point where grid == (1,) for a shardable N.
    """
    tn = min(requested_tn, n)
    if n >= 256:
        tn = max(128, (tn // 128) * 128)
        if n // tn < 2:  # keep at least 2 grid steps (v7x: one per TensorCore)
            tn = max(128, ((n // 2) // 128) * 128)
    return tn


def _vmem_limit_bytes(m, tn, itemsize):
    # Resident A + double-buffered (x2, inp, out) column tiles + headroom,
    # clamped generation-aware (v5e/v6e: 128 MiB, v7x: 64 MiB physical VMEM).
    need = itemsize * (2 * m * m + 2 * 3 * m * tn) + (4 << 20)
    try:
        cap = pltpu.get_tpu_info().vmem_capacity_bytes
    except Exception:
        cap = 64 << 20
    return int(min(max(need, 8 << 20), int(cap * 3 // 4)))


def _build_tiled_call(m, n, tn, out_dtype, *, single_buffer_a, donate_inp, vmem_limit):
    grid = (pl.cdiv(n, tn),)  # ragged last tile OK: columns are independent,
    #                           Pallas drops out-of-bounds output writes.
    itemsize = jnp.dtype(out_dtype).itemsize
    cost = pl.CostEstimate(
        flops=2 * m * m * n,
        transcendentals=0,
        bytes_accessed=itemsize * (m * m + 3 * m * n),
    )
    a_kwargs = {"pipeline_mode": pl.Buffered(1)} if single_buffer_a else {}
    return pl.pallas_call(
        _mm_add_kernel,
        out_shape=jax.ShapeDtypeStruct((m, n), out_dtype),
        grid=grid,
        in_specs=[
            # A: constant index_map -> resident across the grid.  Single-buffer
            # it (when supported) so its VMEM footprint is not doubled (matters
            # on v7x's 64 MiB VMEM at large M).
            pl.BlockSpec((m, m), lambda j: (0, 0), **a_kwargs),
            pl.BlockSpec((m, tn), lambda j: (0, j)),  # x2 column tile
            pl.BlockSpec((m, tn), lambda j: (0, j)),  # inp column tile
        ],
        out_specs=pl.BlockSpec((m, tn), lambda j: (0, j)),
        # Donate inp's HBM buffer to the output (inp tile j is read before the
        # aliased out tile j is written back on the same core -> safe).
        input_output_aliases={2: 0} if donate_inp else {},
        compiler_params=pltpu.CompilerParams(
            dimension_semantics=("parallel",),
            vmem_limit_bytes=vmem_limit,
        ),
        cost_estimate=cost,
    )


# --------------------------------------------------------------------------
# Public wrappers
# --------------------------------------------------------------------------
def chained_mm_add_small(x1, x2, inp):
    """Latency path for tiny shapes (e.g. 10x10): no grid, one VMEM block.
    For many independent tiny instances, batch them into a single pallas_call
    with a grid over the batch instead of one dispatch per problem."""
    m, _, n = _check_shapes(x1, x2, inp)
    vmem = pl.BlockSpec(memory_space=pltpu.MemorySpace.VMEM)
    return pl.pallas_call(
        _small_kernel,
        out_shape=jax.ShapeDtypeStruct((m, n), inp.dtype),
        in_specs=[vmem, vmem, vmem],
        out_specs=vmem,
    )(x1, x2, inp)


def chained_mm_add_tiled(x1, x2, inp, *, tn=256, donate_inp=True,
                         use_bf16_operands=False):
    """Scaled-shape path: precompute A = x1 @ x1, then tile only over N.

    use_bf16_operands casts A/x2 to bf16 (f32 accumulation kept) for ~3x MXU
    throughput; off by default since accuracy requirements are unspecified.
    """
    m, k, n = _check_shapes(x1, x2, inp)
    tn = _pick_tn(n, tn)
    itemsize = jnp.dtype(inp.dtype).itemsize
    vmem_limit = _vmem_limit_bytes(m, tn, itemsize)

    # ---- One-time A = x1 @ x1 (its M^3 cost is amortized over all N tiles).
    # TODO(synk): tile this precompute for very large M instead of one block.
    a = pl.pallas_call(
        _square_kernel,
        out_shape=jax.ShapeDtypeStruct((m, m), x1.dtype),
        in_specs=[pl.BlockSpec(memory_space=pltpu.MemorySpace.VMEM)],
        out_specs=pl.BlockSpec(memory_space=pltpu.MemorySpace.VMEM),
        cost_estimate=pl.CostEstimate(
            flops=2 * m * m * m, transcendentals=0,
            bytes_accessed=2 * itemsize * m * m),
    )(x1)

    if use_bf16_operands:
        a = a.astype(jnp.bfloat16)
        x2 = x2.astype(jnp.bfloat16)

    # ---- Main tiled call.  Prefer a single-buffered resident A; fall back to
    # the default double-buffered BlockSpec on jax versions where
    # pipeline_mode=pl.Buffered(1) is not accepted.
    try:
        call = _build_tiled_call(m, n, tn, inp.dtype, single_buffer_a=True,
                                 donate_inp=donate_inp, vmem_limit=vmem_limit)
        return call(a, x2, inp)
    except Exception:
        call = _build_tiled_call(m, n, tn, inp.dtype, single_buffer_a=False,
                                 donate_inp=donate_inp, vmem_limit=vmem_limit)
        return call(a, x2, inp)


def reference(x1, x2, inp):
    hp = jax.lax.Precision.HIGHEST
    v1 = jnp.dot(x1, x2, precision=hp)
    v2 = jnp.dot(x1, v1, precision=hp)
    return v2 + inp


# --------------------------------------------------------------------------
if __name__ == "__main__":
    key = jax.random.PRNGKey(0)
    k1, k2, k3, k4, k5, k6 = jax.random.split(key, 6)

    # --- Original module shapes: (10, 10) float32 -> gridless small path. ---
    x1 = jax.random.normal(k1, (10, 10), dtype=jnp.float32)
    x2 = jax.random.normal(k2, (10, 10), dtype=jnp.float32)
    inp = jax.random.normal(k3, (10, 10), dtype=jnp.float32)

    out_small = jax.block_until_ready(chained_mm_add_small(x1, x2, inp))
    ref_small = reference(x1, x2, inp)
    assert out_small.shape == (10, 10)
    assert jnp.allclose(out_small, ref_small, atol=2e-3, rtol=1e-3)

    # --- Scaled shapes exercising the N-tiled, megacore-parallel path. ---
    M = K = 256
    N = 512
    x1b = jax.random.normal(k4, (M, K), dtype=jnp.float32)
    x2b = jax.random.normal(k5, (K, N), dtype=jnp.float32)
    inpb = jax.random.normal(k6, (M, N), dtype=jnp.float32)

    # Compute the reference BEFORE the kernel call: inpb is donated to the
    # output.  Note (x1@x1)@x2 rounds slightly differently than x1@(x1@x2);
    # covered by the tolerance below.
    ref_big = jax.block_until_ready(reference(x1b, x2b, inpb))
    out_big = jax.block_until_ready(chained_mm_add_tiled(x1b, x2b, inpb, tn=256))
    assert out_big.shape == (M, N)
    assert jnp.allclose(out_big, ref_big, atol=5e-1, rtol=1e-2)

    print("KERNEL_OK")
</pallas_src>

<mosaic_0001>
module attributes {stable_mosaic.version = 11 : i64} {
  func.func @_small_kernel(%arg0: memref<10x10xf32, #tpu.memory_space<vmem>>, %arg1: memref<10x10xf32, #tpu.memory_space<vmem>>, %arg2: memref<10x10xf32, #tpu.memory_space<vmem>>, %arg3: memref<10x10xf32, #tpu.memory_space<vmem>>) attributes {dimension_semantics = [], scalar_prefetch = 0 : i64, scratch_operands = 0 : i64, tpu.core_type = #tpu.core_type<tc>} {
    %c0 = arith.constant 0 : index
    %c0_0 = arith.constant 0 : index
    %0 = vector.load %arg0[%c0, %c0_0] : memref<10x10xf32, #tpu.memory_space<vmem>>, vector<10x10xf32>
    %cst = arith.constant dense<0.000000e+00> : vector<10x10xf32>
    %1 = tpu.matmul %0, %0, %cst {dimension_numbers = #tpu.dot_dimension_numbers<[1], [0], [0], [1], [0, 0, 1, 1], [], []>} : vector<10x10xf32>, vector<10x10xf32>, vector<10x10xf32> -> vector<10x10xf32>
    %c0_1 = arith.constant 0 : index
    %c0_2 = arith.constant 0 : index
    %2 = vector.load %arg1[%c0_1, %c0_2] : memref<10x10xf32, #tpu.memory_space<vmem>>, vector<10x10xf32>
    %cst_3 = arith.constant dense<0.000000e+00> : vector<10x10xf32>
    %3 = tpu.matmul %1, %2, %cst_3 {dimension_numbers = #tpu.dot_dimension_numbers<[1], [0], [0], [1], [0, 0, 1, 1], [], []>} : vector<10x10xf32>, vector<10x10xf32>, vector<10x10xf32> -> vector<10x10xf32>
    %c0_4 = arith.constant 0 : index
    %c0_5 = arith.constant 0 : index
    %4 = vector.load %arg2[%c0_4, %c0_5] : memref<10x10xf32, #tpu.memory_space<vmem>>, vector<10x10xf32>
    %5 = arith.addf %3, %4 : vector<10x10xf32>
    %c0_6 = arith.constant 0 : index
    %c0_7 = arith.constant 0 : index
    %6 = vector.load %arg3[%c0_6, %c0_7] : memref<10x10xf32, #tpu.memory_space<vmem>>, vector<10x10xf32>
    tpu.vector_store %arg3[%c0_6, %c0_7], %5 {strides = array<i32>} : memref<10x10xf32, #tpu.memory_space<vmem>>, vector<10x10xf32>,
    return
  }
}

</mosaic_0001>

<llo_original>
// kernel: tpu_custom_call.1
$region0: #{tpu_custom_call.1}
  #allocation0 [shape = 'u32[]', space=smem, size = 0x4, offset = 0x4, fixed_abs, tag = 'smem constant byte address 0x4 - core index']
  #allocation1 [shape = 'u32[144,128]{1,0:T(1,128)}', space=vmem, size = 0x12000, scoped, tag = 'internal scratch']
  %s0 = inlined_call_operand.hbm [shape: f32[10,10], index: 0, kind: input, shape index: {}]
  %s1 = inlined_call_operand.hbm [shape: f32[10,10], index: 1, kind: input, shape index: {}]
  %s2 = inlined_call_operand.hbm [shape: f32[10,10], index: 2, kind: input, shape index: {}]
  %s3 = inlined_call_operand.hbm [shape: f32[10,10], index: 3, kind: output, shape index: {}]
  %s4 = sld [smem:[#allocation0]]
  $region34: #{tpu_custom_call.1} parent=0
    _
  %s6 = ssub.s32 1, %s4
  %s7 = scalar_select 0, %s6, %s4
  $region1: #{tpu_custom_call.1} parent=0
    #allocation2 [shape = 'u8[8192]{0}', space=vmem, size = 0x2000, scoped, tag = 'input window, operand 0, single buffered']
    #allocation3 [shape = 's32[1]{0}', space=sflag, size = 0x4, scoped, tag = 'scoped memory for tpu_custom_call.1']
    #allocation4 [shape = 's32[1]{0}', space=sflag, size = 0x4, scoped, tag = 'scoped memory for tpu_custom_call.1']
    #allocation5 [shape = 'u8[8192]{0}', space=vmem, size = 0x2000, scoped, tag = 'input window, operand 1, single buffered']
    #allocation6 [shape = 's32[1]{0}', space=sflag, size = 0x4, scoped, tag = 'scoped memory for tpu_custom_call.1']
    #allocation7 [shape = 'u8[8192]{0}', space=vmem, size = 0x2000, scoped, tag = 'input window, operand 2, single buffered']
    #allocation8 [shape = 'u8[8192]{0}', space=vmem, size = 0x2000, scoped, tag = 'output window, operand 0, single buffered']
    %8 = vsyncpa [#allocation3], 0
    %9 = vsyncpa [#allocation6], 0
    %10 = vsyncpa [#allocation4], 0
    // Predicated region
    $region2: #{tpu_custom_call.1} parent=1 // pred_check
      _
    $region3: #{tpu_custom_call.1} parent=1 // pred_check_branch
      %12 = sbr.rel (0) target = $region5
    $region4: #{tpu_custom_call.1} parent=1 // pred_region
      %s14 = ssub.s32 256, 256
      %15 = vsyncadd [#allocation3], %s14
      %s16 = sshll.u32 [#allocation2], 4
      %s17 = int_to_ptr.vmem [resolvable:$true] %s16
      %22 = dma.hbm_to_vmem [thread:$0]  %s0, 256, %s17, [#allocation3], 128, 128, 8
    $region5: #{tpu_custom_call.1} parent=1 // pred_fallthru
      _
    // Predicated region
    $region6: #{tpu_custom_call.1} parent=1 // pred_check
      _
    $region7: #{tpu_custom_call.1} parent=1 // pred_check_branch
      %24 = sbr.rel (0) target = $region9
    $region8: #{tpu_custom_call.1} parent=1 // pred_region
      %s26 = ssub.s32 256, 256
      %27 = vsyncadd [#allocation6], %s26
      %s28 = sshll.u32 [#allocation5], 4
      %s29 = int_to_ptr.vmem [resolvable:$true] %s28
      %34 = dma.hbm_to_vmem [thread:$0]  %s1, 256, %s29, [#allocation6], 128, 128, 8
    $region9: #{tpu_custom_call.1} parent=1 // pred_fallthru
      _
    // Predicated region
    $region10: #{tpu_custom_call.1} parent=1 // pred_check
      _
    $region11: #{tpu_custom_call.1} parent=1 // pred_check_branch
      %36 = sbr.rel (0) target = $region13
    $region12: #{tpu_custom_call.1} parent=1 // pred_region
      %s38 = ssub.s32 256, 256
      %39 = vsyncadd [#allocation6], %s38
      %s40 = sshll.u32 [#allocation7], 4
      %s41 = int_to_ptr.vmem [resolvable:$true] %s40
      %46 = dma.hbm_to_vmem [thread:$0]  %s2, 256, %s41, [#allocation6], 128, 128, 8
    $region13: #{tpu_custom_call.1} parent=1 // pred_fallthru
      _
    // Predicated region
    $region14: #{tpu_custom_call.1} parent=1 // pred_check
      _
    $region15: #{tpu_custom_call.1} parent=1 // pred_check_branch
      %48 = sbr.rel (0) target = $region17
    $region16: #{tpu_custom_call.1} parent=1 // pred_region
      %49 = dma.done [#allocation3], 256
    $region17: #{tpu_custom_call.1} parent=1 // pred_fallthru
      _
    // Predicated region
    $region18: #{tpu_custom_call.1} parent=1 // pred_check
      _
    $region19: #{tpu_custom_call.1} parent=1 // pred_check_branch
      %51 = sbr.rel (0) target = $region21
    $region20: #{tpu_custom_call.1} parent=1 // pred_region
      %52 = dma.done [#allocation6], 256
    $region21: #{tpu_custom_call.1} parent=1 // pred_fallthru
      _
    // Predicated region
    $region22: #{tpu_custom_call.1} parent=1 // pred_check
      _
    $region23: #{tpu_custom_call.1} parent=1 // pred_check_branch
      %54 = sbr.rel (0) target = $region25
    $region24: #{tpu_custom_call.1} parent=1 // pred_region
      %55 = dma.done [#allocation6], 256
    $region25: #{tpu_custom_call.1} parent=1 // pred_fallthru
      _
    %v56 = vld [vmem:[#allocation2] sm:$0xff]
    %v57 = vld [vmem:[#allocation2 + $0x8] sm:$0x3]
    %vm58 = vcmask 80896
    %v60 = vsel %vm58, %v56, 0
    %v63 = vsel %vm58, %v57, 0
    %vm65 = vcmask 1041408
    %v66 = vsel %vm65, %v57, 0
    %68 = vmatprep.subr.mxu0 0.0
    %69 = vmatpush1.msra.mxu0 %v56
    %70 = vmatprep.subr.mxu0 0.0
    %71 = vmatpush1.msra.mxu0 %v66
    %72 = vmatprep.subr.mxu0 0.0
    %73 = vmatpush1.msra.mxu0 0.0
    %74 = vmatprep.subr.mxu0 0.0
    %75 = vmatpush1.msra.mxu0 0.0
    %76 = vmatprep.subr.mxu0 0.0
    %77 = vmatpush1.msra.mxu0 0.0
    %78 = vmatprep.subr.mxu0 0.0
    %79 = vmatpush1.msra.mxu0 0.0
    %80 = vmatprep.subr.mxu0 0.0
    %81 = vmatpush1.msra.mxu0 0.0
    %82 = vmatprep.subr.mxu0 0.0
    %83 = vmatpush1.msra.mxu0 0.0
    %84 = vmatprep.subr.mxu0 0.0
    %85 = vmatpush1.msra.mxu0 0.0
    %86 = vmatprep.subr.mxu0 0.0
    %87 = vmatpush1.msra.mxu0 0.0
    %88 = vmatprep.subr.mxu0 0.0
    %89 = vmatpush1.msra.mxu0 0.0
    %90 = vmatprep.subr.mxu0 0.0
    %91 = vmatpush1.msra.mxu0 0.0
    %92 = vmatprep.subr.mxu0 0.0
    %93 = vmatpush1.msra.mxu0 0.0
    %94 = vmatprep.subr.mxu0 0.0
    %95 = vmatpush1.msra.mxu0 0.0
    %96 = vmatprep.subr.mxu0 0.0
    %97 = vmatpush1.msra.mxu0 0.0
    %98 = vmatprep.subr.mxu0 0.0
    %99 = vmatpush1.msra.mxu0 0.0
    %100 = vmatprep.subr.mxu0 0.0
    %101 = vmatpush1.msra.mxu0 0.0
    %102 = vmatprep.subr.mxu0 0.0
    %103 = vmatpush1.msra.mxu0 0.0
    %104 = vmatprep.subr.mxu0 0.0
    %105 = vmatpush1.msra.mxu0 0.0
    %106 = vmatprep.subr.mxu0 0.0
    %107 = vmatpush1.msra.mxu0 0.0
    %108 = vmatprep.subr.mxu0 0.0
    %109 = vmatpush1.msra.mxu0 0.0
    %110 = vmatprep.subr.mxu0 0.0
    %111 = vmatpush1.msra.mxu0 0.0
    %112 = vmatprep.subr.mxu0 0.0
    %113 = vmatpush1.msra.mxu0 0.0
    %114 = vmatprep.subr.mxu0 0.0
    %115 = vmatpush1.msra.mxu0 0.0
    %116 = vmatprep.subr.mxu0 0.0
    %117 = vmatpush1.msra.mxu0 0.0
    %118 = vmatprep.subr.mxu0 0.0
    %119 = vmatpush1.msra.mxu0 0.0
    %120 = vmatprep.subr.mxu0 0.0
    %121 = vmatpush1.msra.mxu0 0.0
    %122 = vmatprep.subr.mxu0 0.0
    %123 = vmatpush1.msra.mxu0 0.0
    %124 = vmatprep.subr.mxu0 0.0
    %125 = vmatpush1.msra.mxu0 0.0
    %126 = vmatprep.subr.mxu0 0.0
    %127 = vmatpush1.msra.mxu0 0.0
    %128 = vmatprep.subr.mxu0 0.0
    %129 = vmatpush1.msra.mxu0 0.0
    %130 = vmatprep.subr.mxu0 0.0
    %131 = vmatpush1.msra.mxu0 0.0
    %132 = vmatprep.mubr.f32.mxu0 0.0
    %133 = vmatmul.mubr.f32.gmra.mrb[0].mxu0 %v60
    %v134 = vpop.f32.mrb[0].mxu0
    %v135 = vadd.f32 0.0, %v134
    %v136 = vpop.f32.mrb[0].mxu0
    %137 = vmatprep.mubr.f32.mxu0 0.0
    %138 = vmatmul.mubr.f32.gmra.mrb[0].mxu0 %v63
    %v139 = vpop.f32.mrb[0].mxu0
    %v140 = vadd.f32 0.0, %v139
    %v141 = vpop.f32.mrb[0].mxu0
    %142 = vdwg.mxu0
    %v143 = vld [vmem:[#allocation5] sm:$0xff]
    %v144 = vld [vmem:[#allocation5 + $0x8] sm:$0x3]
    %v145 = vld [vmem:[#allocation7] sm:$0xff]
    %v146 = vld [vmem:[#allocation7 + $0x8] sm:$0x3]
    %v148 = vsel %vm58, %v135, 0
    %v151 = vsel %vm58, %v140, 0
    %v154 = vsel %vm65, %v144, 0
    %156 = vmatprep.subr.mxu0 0.0
    %157 = vmatpush1.msra.mxu0 %v143
    %158 = vmatprep.subr.mxu0 0.0
    %159 = vmatpush1.msra.mxu0 %v154
    %160 = vmatprep.subr.mxu0 0.0
    %161 = vmatpush1.msra.mxu0 0.0
    %162 = vmatprep.subr.mxu0 0.0
    %163 = vmatpush1.msra.mxu0 0.0
    %164 = vmatprep.subr.mxu0 0.0
    %165 = vmatpush1.msra.mxu0 0.0
    %166 = vmatprep.subr.mxu0 0.0
    %167 = vmatpush1.msra.mxu0 0.0
    %168 = vmatprep.subr.mxu0 0.0
    %169 = vmatpush1.msra.mxu0 0.0
    %170 = vmatprep.subr.mxu0 0.0
    %171 = vmatpush1.msra.mxu0 0.0
    %172 = vmatprep.subr.mxu0 0.0
    %173 = vmatpush1.msra.mxu0 0.0
    %174 = vmatprep.subr.mxu0 0.0
    %175 = vmatpush1.msra.mxu0 0.0
    %176 = vmatprep.subr.mxu0 0.0
    %177 = vmatpush1.msra.mxu0 0.0
    %178 = vmatprep.subr.mxu0 0.0
    %179 = vmatpush1.msra.mxu0 0.0
    %180 = vmatprep.subr.mxu0 0.0
    %181 = vmatpush1.msra.mxu0 0.0
    %182 = vmatprep.subr.mxu0 0.0
    %183 = vmatpush1.msra.mxu0 0.0
    %184 = vmatprep.subr.mxu0 0.0
    %185 = vmatpush1.msra.mxu0 0.0
    %186 = vmatprep.subr.mxu0 0.0
    %187 = vmatpush1.msra.mxu0 0.0
    %188 = vmatprep.subr.mxu0 0.0
    %189 = vmatpush1.msra.mxu0 0.0
    %190 = vmatprep.subr.mxu0 0.0
    %191 = vmatpush1.msra.mxu0 0.0
    %192 = vmatprep.subr.mxu0 0.0
    %193 = vmatpush1.msra.mxu0 0.0
    %194 = vmatprep.subr.mxu0 0.0
    %195 = vmatpush1.msra.mxu0 0.0
    %196 = vmatprep.subr.mxu0 0.0
    %197 = vmatpush1.msra.mxu0 0.0
    %198 = vmatprep.subr.mxu0 0.0
    %199 = vmatpush1.msra.mxu0 0.0
    %200 = vmatprep.subr.mxu0 0.0
    %201 = vmatpush1.msra.mxu0 0.0
    %202 = vmatprep.subr.mxu0 0.0
    %203 = vmatpush1.msra.mxu0 0.0
    %204 = vmatprep.subr.mxu0 0.0
    %205 = vmatpush1.msra.mxu0 0.0
    %206 = vmatprep.subr.mxu0 0.0
    %207 = vmatpush1.msra.mxu0 0.0
    %208 = vmatprep.subr.mxu0 0.0
    %209 = vmatpush1.msra.mxu0 0.0
    %210 = vmatprep.subr.mxu0 0.0
    %211 = vmatpush1.msra.mxu0 0.0
    %212 = vmatprep.subr.mxu0 0.0
    %213 = vmatpush1.msra.mxu0 0.0
    %214 = vmatprep.subr.mxu0 0.0
    %215 = vmatpush1.msra.mxu0 0.0
    %216 = vmatprep.subr.mxu0 0.0
    %217 = vmatpush1.msra.mxu0 0.0
    %218 = vmatprep.subr.mxu0 0.0
    %219 = vmatpush1.msra.mxu0 0.0
    %220 = vmatprep.mubr.f32.mxu0 0.0
    %221 = vmatmul.mubr.f32.gmra.mrb[0].mxu0 %v148
    %v222 = vpop.f32.mrb[0].mxu0
    %v223 = vadd.f32 %v145, %v222
    %v224 = vpop.f32.mrb[0].mxu0
    %225 = vmatprep.mubr.f32.mxu0 0.0
    %226 = vmatmul.mubr.f32.gmra.mrb[0].mxu0 %v151
    %v227 = vpop.f32.mrb[0].mxu0
    %v228 = vadd.f32 %v146, %v227
    %v229 = vpop.f32.mrb[0].mxu0
    %230 = vdwg.mxu0
    %231 = vst.msk [vmem:[#allocation8] sm:$0xff] %vm58, %v223
    %vm232 = vcmask 74752
    %233 = vst.msk [vmem:[#allocation8 + $0x8] sm:$0x3] %vm232, %v228
    // Predicated region
    $region26: #{tpu_custom_call.1} parent=1 // pred_check
      _
    $region27: #{tpu_custom_call.1} parent=1 // pred_check_branch
      %235 = sbr.rel (0) target = $region29
    $region28: #{tpu_custom_call.1} parent=1 // pred_region
      %s237 = ssub.s32 256, 256
      %238 = vsyncadd [#allocation4], %s237
      %s239 = sshll.u32 [#allocation8], 4
      %s240 = int_to_ptr.vmem [resolvable:$true] %s239
      %245 = dma.vmem_to_hbm [thread:$0]  %s240, 256, %s3, [#allocation4], 128, 128, 8
    $region29: #{tpu_custom_call.1} parent=1 // pred_fallthru
      _
    // Predicated region
    $region30: #{tpu_custom_call.1} parent=1 // pred_check
      _
    $region31: #{tpu_custom_call.1} parent=1 // pred_check_branch
      %247 = sbr.rel (0) target = $region33
    $region32: #{tpu_custom_call.1} parent=1 // pred_region
      %248 = dma.done [#allocation4], 256
    $region33: #{tpu_custom_call.1} parent=1 // pred_fallthru
      _
    %249 = vsyncpa [#allocation3], 1
    %250 = vsyncpa [#allocation6], 1
    %251 = vsyncpa [#allocation4], 1

</llo_original>
